<compile_context>
chip_gen: v5e
topology: v5e:2x2
jax: 0.10.0
libtpu: 0.0.40
codegen_flags: <defaults>
</compile_context>

<pallas_src>
import jax
import jax.numpy as jnp
from jax import lax
from jax.experimental import pallas as pl
from jax.experimental.pallas import tpu as pltpu


def _round_up(n, m):
    return ((n + m - 1) // m) * m


def _make_nonlocal_kernel(p_pad, p_ones, ts, use_bf16_scores):
    """Kernel for grid (batch, s'-block).  s' is the softmax contraction axis."""

    def kernel(x_ref, phit_ref, wtg_ref, wf_ref, o_ref, acc_sc, m_sc):
        j = pl.program_id(1)

        @pl.when(j == 0)
        def _init():
            acc_sc[...] = jnp.zeros_like(acc_sc)
            m_sc[...] = jnp.full_like(m_sc, -jnp.inf)

        # s'-block sliced from the VMEM-resident full x: no second HBM stream of x.
        start = pl.multiple_of(j * ts, ts)
        xblk = x_ref[:, pl.ds(start, ts)]                                # (C, TS)

        # Fused theta+g projection for this s'-block: (2*P_pad, C) @ (C, TS).
        proj = jnp.dot(wtg_ref[...], xblk,
                       preferred_element_type=jnp.float32)               # (2*P_pad, TS)
        theta_blk = proj[:p_pad, :]                                       # (P_pad, TS)
        g_blk = proj[p_pad:, :]                                           # (P_pad, TS)

        # Softmax denominator on the (under-fed) MXU: turn the zero-padded g row
        # `p_ones` into a ones-row so acc row p_ones accumulates the column sums of e
        # with the same alpha rescaling as the rest of the accumulator.
        row_ids = lax.broadcasted_iota(jnp.int32, g_blk.shape, 0)
        g_blk = jnp.where(row_ids == p_ones, 1.0, g_blk)

        # Transposed scores: tpT[s', s] = sum_p theta[p, s'] * phi_t[p, s].
        tpT = lax.dot_general(theta_blk, phit_ref[...],
                              dimension_numbers=(((0,), (0,)), ((), ())),
                              preferred_element_type=jnp.float32)         # (TS, HW)

        # Online statistics of the *global* (flattened HW*HW) softmax.
        m_new = jnp.maximum(m_sc[...], jnp.max(tpT, keepdims=True))       # (1, 1)
        alpha = jnp.exp(m_sc[...] - m_new)                                # (1, 1)
        shifted = tpT - m_new                                             # (TS, HW) <= 0
        if use_bf16_scores:
            # v6e / v7x only: EUP + MXU run bf16 at ~2x f32; accumulation stays f32.
            e = jnp.exp(shifted.astype(jnp.bfloat16))
            g_mat = g_blk.astype(jnp.bfloat16)
        else:
            e = jnp.exp(shifted)
            g_mat = g_blk
        # paste accumulation: contracts e's MAJOR dim (canonical MXU feed).
        acc_sc[...] = alpha * acc_sc[...] + jnp.dot(
            g_mat, e, preferred_element_type=jnp.float32)                 # (P_pad, HW)
        m_sc[...] = m_new

        @pl.when(j == pl.num_programs(1) - 1)
        def _finalize():
            acc = acc_sc[...]                                             # (P_pad, HW)
            # Denominator came for free off MXU row p_ones; use the EXACT reciprocal
            # (it is a single scalar, approx would only add ~1e-3 relative error).
            z = jnp.sum(acc[p_ones:p_ones + 1, :], keepdims=True)         # (1, 1)
            paste = acc * (1.0 / z)                                       # (P_pad, HW)
            y = jnp.dot(wf_ref[...], paste,
                        preferred_element_type=jnp.float32)               # (C, HW)
            o_ref[...] = (y + x_ref[...]).astype(o_ref.dtype)             # residual add

    return kernel


def non_local_forward(x, w_theta, w_phi, w_g, w_final, *, block_s=256,
                      use_bf16_scores=False):
    """x: (B, C, H, W) NCHW float32; 1x1-conv weights are (out, in); returns (B, C, H, W)."""
    B, C, H, W = x.shape
    assert H == W, "nonLocal implicitly assumes square spatial dims"
    HW = H * W
    P = w_theta.shape[0]
    # Sublane-align the planes axis AND always reserve a spare row (index P): the kernel
    # turns that zero-padded g row into a ones-row for the MXU denominator accumulation.
    P_pad = _round_up(max(P + 1, 8), 8)

    ts = min(block_s, HW)                           # s'-block size (contraction axis)
    assert HW % ts == 0, "H*W must be divisible by the s'-block size"
    n_blk = HW // ts

    f32 = jnp.float32
    x_flat = x.reshape(B, C, HW).astype(f32)        # s = h*W + w (row-major flatten)

    # phi projection + per-channel spatial transpose host-side on the small (B, P, HW)
    # tensor; the global flattened softmax is permutation-invariant, so the kernel never
    # needs an in-kernel spatial transpose.
    # TODO(synk): fold the phi projection (third weight band) + the HxH spatial transpose
    # of the small paste into the kernel once Mosaic transposes of non-tile-aligned
    # (H, H) minors are verified to lower on v5e/v6e/v7x.
    phi = jnp.einsum('pc,bchw->bphw', w_phi.astype(f32), x.astype(f32))
    phi_t = jnp.swapaxes(phi, 2, 3).reshape(B, P, HW)      # s = w*H + h flatten
    if P_pad > P:
        phi_t = jnp.pad(phi_t, ((0, 0), (0, P_pad - P), (0, 0)))

    # theta and g stacked into one projection weight, each band zero-padded to P_pad.
    wtg = jnp.zeros((2 * P_pad, C), f32)
    wtg = wtg.at[:P, :].set(w_theta.astype(f32))
    wtg = wtg.at[P_pad:P_pad + P, :].set(w_g.astype(f32))
    # Zero column at index P (the ones-row) keeps the final conv unaffected by it.
    wf_pad = jnp.zeros((C, P_pad), f32).at[:, :P].set(w_final.astype(f32))

    # Explicit VMEM budget: double-buffered x/out/phi_t + scratch + (TS, HW) temporaries.
    # (v7x note: 64 MiB physical — cap block_s and single-buffer the batch-invariant
    #  blocks for production-sized C/HW before raising this limit.)
    vmem_bytes = 4 * (4 * C * HW            # full-x and output (double buffered)
                      + 2 * P_pad * HW      # phi_t (double buffered)
                      + P_pad * HW          # paste accumulator scratch
                      + 4 * ts * HW         # tpT / e temporaries headroom
                      + 2 * P_pad * ts      # projection block
                      + 3 * P_pad * C) + (2 << 20)
    vmem_bytes = int(min(max(vmem_bytes, 16 * 1024 * 1024), 100 * 1024 * 1024))

    kernel = _make_nonlocal_kernel(P_pad, P, ts, use_bf16_scores)

    out = pl.pallas_call(
        kernel,
        out_shape=jax.ShapeDtypeStruct((B, C, HW), x.dtype),
        grid_spec=pltpu.PrefetchScalarGridSpec(
            num_scalar_prefetch=0,
            grid=(B, n_blk),
            in_specs=[
                pl.BlockSpec((None, C, HW), lambda b, j: (b, 0, 0)),       # full x
                pl.BlockSpec((None, P_pad, HW), lambda b, j: (b, 0, 0)),   # phi_t
                pl.BlockSpec((2 * P_pad, C), lambda b, j: (0, 0)),         # stacked W
                pl.BlockSpec((C, P_pad), lambda b, j: (0, 0)),             # final W
            ],
            out_specs=pl.BlockSpec((None, C, HW), lambda b, j: (b, 0, 0)),
            scratch_shapes=[
                pltpu.VMEM((P_pad, HW), jnp.float32),   # paste accumulator (+ z row)
                pltpu.VMEM((1, 1), jnp.float32),        # running global max
            ]),
        compiler_params=pltpu.CompilerParams(
            dimension_semantics=("parallel", "arbitrary"),
            vmem_limit_bytes=vmem_bytes),
    )(x_flat, phi_t, wtg, wf_pad)
    return out.reshape(B, C, H, W)


def non_local_reference(x, w_theta, w_phi, w_g, w_final):
    """Pure-JAX mirror of the PyTorch forward (for verification)."""
    B, C, H, W = x.shape
    P = w_theta.shape[0]
    HW = H * W
    outs = []
    for b in range(B):
        xb = x[b].reshape(C, HW)
        theta = w_theta @ xb                                  # (P, HW)
        phi = w_phi @ xb
        g = w_g @ xb
        tp = phi.T @ theta                                    # (HW, HW)
        sm = jax.nn.softmax(tp.reshape(-1)).reshape(HW, HW)   # global softmax
        out = (sm @ g.T).T                                    # (P, HW)
        paste = jnp.swapaxes(out.reshape(P, H, H), 1, 2)      # per-channel .t()
        y = jnp.einsum('cp,phw->chw', w_final, paste) + x[b]
        outs.append(y)
    return jnp.stack(outs)


if __name__ == "__main__":
    B, C, P, H = 2, 8, 4, 16      # batch, inplanes, planes, spatial (H == W)
    key = jax.random.PRNGKey(0)
    kx, kt, kp, kg, kf = jax.random.split(key, 5)
    x = jax.random.normal(kx, (B, C, H, H), jnp.float32)
    # deterministic synthetic 1x1-conv weights (shape (out, in), no bias)
    w_theta = 0.3 * jax.random.normal(kt, (P, C), jnp.float32)
    w_phi = 0.3 * jax.random.normal(kp, (P, C), jnp.float32)
    w_g = 0.3 * jax.random.normal(kg, (P, C), jnp.float32)
    w_final = 0.3 * jax.random.normal(kf, (C, P), jnp.float32)

    out = non_local_forward(x, w_theta, w_phi, w_g, w_final, block_s=256)
    out = jax.block_until_ready(out)

    ref = non_local_reference(x, w_theta, w_phi, w_g, w_final)
    assert out.shape == (B, C, H, H)
    assert bool(jnp.all(jnp.isfinite(out)))
    err = float(jnp.max(jnp.abs(out - ref)))
    assert bool(jnp.allclose(out, ref, rtol=1e-3, atol=1e-3)), err
    print("KERNEL_OK")
</pallas_src>

<mosaic_0001>
module attributes {stable_mosaic.version = 11 : i64} {
  func.func @kernel(%arg0: i32, %arg1: i32, %arg2: memref<1x8x256xf32, #tpu.memory_space<vmem>>, %arg3: memref<1x8x256xf32, #tpu.memory_space<vmem>>, %arg4: memref<16x8xf32, #tpu.memory_space<vmem>>, %arg5: memref<8x8xf32, #tpu.memory_space<vmem>>, %arg6: memref<1x8x256xf32, #tpu.memory_space<vmem>>, %arg7: memref<8x256xf32, #tpu.memory_space<vmem>>, %arg8: memref<1x1xf32, #tpu.memory_space<vmem>>) attributes {dimension_semantics = [#tpu.dimension_semantics<parallel>, #tpu.dimension_semantics<arbitrary>], iteration_bounds = array<i64: 2, 1>, scalar_prefetch = 0 : i64, scratch_operands = 2 : i64, tpu.core_type = #tpu.core_type<tc>, window_params = [{transform_indices = @transform_0, window_bounds = array<i64: 1, 8, 256>}, {transform_indices = @transform_1, window_bounds = array<i64: 1, 8, 256>}, {pipeline_mode = #tpu.pipeline_mode<synchronous>, transform_indices = @transform_2, window_bounds = array<i64: 16, 8>}, {pipeline_mode = #tpu.pipeline_mode<synchronous>, transform_indices = @transform_3, window_bounds = array<i64: 8, 8>}, {transform_indices = @transform_4, window_bounds = array<i64: 1, 8, 256>}]} {
    %c0_i32 = arith.constant 0 : i32
    %0 = arith.cmpi eq, %arg1, %c0_i32 : i32
    %1 = arith.extui %0 : i1 to i32
    %c0_i32_0 = arith.constant 0 : i32
    %2 = arith.cmpi ne, %1, %c0_i32_0 : i32
    scf.if %2 {
      %cst_23 = arith.constant 0.000000e+00 : f32
      %43 = vector.broadcast %cst_23 : f32 to vector<8x256xf32>
      %c0_24 = arith.constant 0 : index
      %c0_25 = arith.constant 0 : index
      %44 = vector.load %arg7[%c0_24, %c0_25] : memref<8x256xf32, #tpu.memory_space<vmem>>, vector<8x256xf32>
      tpu.vector_store %arg7[%c0_24, %c0_25], %43 {strides = array<i32>} : memref<8x256xf32, #tpu.memory_space<vmem>>, vector<8x256xf32>,
      %cst_26 = arith.constant 0xFF800000 : f32
      %45 = vector.broadcast %cst_26 : f32 to vector<1x1xf32>
      %c0_27 = arith.constant 0 : index
      %c0_28 = arith.constant 0 : index
      %46 = vector.load %arg8[%c0_27, %c0_28] : memref<1x1xf32, #tpu.memory_space<vmem>>, vector<1x1xf32>
      tpu.vector_store %arg8[%c0_27, %c0_28], %45 {strides = array<i32>} : memref<1x1xf32, #tpu.memory_space<vmem>>, vector<1x1xf32>,
    } else {
    }
    %c256_i32 = arith.constant 256 : i32
    %3 = arith.muli %arg1, %c256_i32 : i32
    %4 = tpu.assume_multiple %3, 256 : i32
    %c0 = arith.constant 0 : index
    %c0_1 = arith.constant 0 : index
    %5 = arith.index_cast %4 : i32 to index
    %6 = vector.load %arg2[%c0, %c0_1, %5] : memref<1x8x256xf32, #tpu.memory_space<vmem>>, vector<1x8x256xf32>
    %7 = vector.shape_cast %6 : vector<1x8x256xf32> to vector<8x256xf32>
    %c0_2 = arith.constant 0 : index
    %c0_3 = arith.constant 0 : index
    %8 = vector.load %arg4[%c0_2, %c0_3] : memref<16x8xf32, #tpu.memory_space<vmem>>, vector<16x8xf32>
    %cst = arith.constant dense<0.000000e+00> : vector<16x256xf32>
    %9 = tpu.matmul %8, %7, %cst {dimension_numbers = #tpu.dot_dimension_numbers<[1], [0], [0], [1], [0, 0, 1, 1], [], []>} : vector<16x8xf32>, vector<8x256xf32>, vector<16x256xf32> -> vector<16x256xf32>
    %10 = vector.extract_strided_slice %9 {offsets = [0, 0], sizes = [8, 256], strides = [1, 1]} : vector<16x256xf32> to vector<8x256xf32>
    %11 = vector.extract_strided_slice %9 {offsets = [8, 0], sizes = [8, 256], strides = [1, 1]} : vector<16x256xf32> to vector<8x256xf32>
    %12 = tpu.iota {dimensions = array<i32: 0>} : vector<8x256xi32>
    %c4_i32 = arith.constant 4 : i32
    %13 = vector.broadcast %c4_i32 : i32 to vector<8x256xi32>
    %14 = arith.cmpi eq, %12, %13 : vector<8x256xi32>
    %cst_4 = arith.constant 1.000000e+00 : f32
    %15 = vector.broadcast %cst_4 : f32 to vector<8x256xf32>
    %16 = arith.select %14, %15, %11 : vector<8x256xi1>, vector<8x256xf32>
    %c0_5 = arith.constant 0 : index
    %c0_6 = arith.constant 0 : index
    %c0_7 = arith.constant 0 : index
    %17 = vector.load %arg3[%c0_5, %c0_6, %c0_7] : memref<1x8x256xf32, #tpu.memory_space<vmem>>, vector<1x8x256xf32>
    %18 = vector.shape_cast %17 : vector<1x8x256xf32> to vector<8x256xf32>
    %cst_8 = arith.constant dense<0.000000e+00> : vector<256x256xf32>
    %19 = tpu.matmul %10, %18, %cst_8 {dimension_numbers = #tpu.dot_dimension_numbers<[0], [0], [1], [1], [0, 1, 1, 1], [], []>} : vector<8x256xf32>, vector<8x256xf32>, vector<256x256xf32> -> vector<256x256xf32>
    %c0_9 = arith.constant 0 : index
    %c0_10 = arith.constant 0 : index
    %20 = vector.load %arg8[%c0_9, %c0_10] : memref<1x1xf32, #tpu.memory_space<vmem>>, vector<1x1xf32>
    %21 = vector.shape_cast %19 : vector<256x256xf32> to vector<1x256x256xf32>
    %cst_11 = arith.constant dense<0xFF800000> : vector<1xf32>
    %22 = vector.multi_reduction <maximumf>, %21, %cst_11 [1, 2] : vector<1x256x256xf32> to vector<1xf32>
    %23 = vector.shape_cast %22 : vector<1xf32> to vector<1x1x1xf32>
    %24 = vector.extract %23[0, 0, 0] : f32 from vector<1x1x1xf32>
    %25 = vector.broadcast %24 : f32 to vector<1x1xf32>
    %26 = arith.maximumf %20, %25 : vector<1x1xf32>
    %c0_12 = arith.constant 0 : index
    %c0_13 = arith.constant 0 : index
    %27 = vector.load %arg8[%c0_12, %c0_13] : memref<1x1xf32, #tpu.memory_space<vmem>>, vector<1x1xf32>
    %28 = arith.subf %27, %26 : vector<1x1xf32>
    %29 = math.exp %28 : vector<1x1xf32>
    %30 = vector.broadcast %26 : vector<1x1xf32> to vector<256x256xf32>
    %31 = arith.subf %19, %30 : vector<256x256xf32>
    %32 = math.exp %31 : vector<256x256xf32>
    %c0_14 = arith.constant 0 : index
    %c0_15 = arith.constant 0 : index
    %33 = vector.load %arg7[%c0_14, %c0_15] : memref<8x256xf32, #tpu.memory_space<vmem>>, vector<8x256xf32>
    %34 = vector.broadcast %29 : vector<1x1xf32> to vector<8x256xf32>
    %35 = arith.mulf %34, %33 : vector<8x256xf32>
    %cst_16 = arith.constant dense<0.000000e+00> : vector<8x256xf32>
    %36 = tpu.matmul %16, %32, %cst_16 {dimension_numbers = #tpu.dot_dimension_numbers<[1], [0], [0], [1], [0, 0, 1, 1], [], []>} : vector<8x256xf32>, vector<256x256xf32>, vector<8x256xf32> -> vector<8x256xf32>
    %37 = arith.addf %35, %36 : vector<8x256xf32>
    %c0_17 = arith.constant 0 : index
    %c0_18 = arith.constant 0 : index
    %38 = vector.load %arg7[%c0_17, %c0_18] : memref<8x256xf32, #tpu.memory_space<vmem>>, vector<8x256xf32>
    tpu.vector_store %arg7[%c0_17, %c0_18], %37 {strides = array<i32>} : memref<8x256xf32, #tpu.memory_space<vmem>>, vector<8x256xf32>,
    %c0_19 = arith.constant 0 : index
    %c0_20 = arith.constant 0 : index
    %39 = vector.load %arg8[%c0_19, %c0_20] : memref<1x1xf32, #tpu.memory_space<vmem>>, vector<1x1xf32>
    tpu.vector_store %arg8[%c0_19, %c0_20], %26 {strides = array<i32>} : memref<1x1xf32, #tpu.memory_space<vmem>>, vector<1x1xf32>,
    %c0_i32_21 = arith.constant 0 : i32
    %40 = arith.cmpi eq, %arg1, %c0_i32_21 : i32
    %41 = arith.extui %40 : i1 to i32
    %c0_i32_22 = arith.constant 0 : i32
    %42 = arith.cmpi ne, %41, %c0_i32_22 : i32
    scf.if %42 {
      %c0_23 = arith.constant 0 : index
      %c0_24 = arith.constant 0 : index
      %43 = vector.load %arg7[%c0_23, %c0_24] : memref<8x256xf32, #tpu.memory_space<vmem>>, vector<8x256xf32>
      %44 = vector.extract_strided_slice %43 {offsets = [4, 0], sizes = [1, 256], strides = [1, 1]} : vector<8x256xf32> to vector<1x256xf32>
      %45 = vector.shape_cast %44 : vector<1x256xf32> to vector<1x1x256xf32>
      %cst_25 = arith.constant dense<0.000000e+00> : vector<1xf32>
      %46 = vector.multi_reduction <add>, %45, %cst_25 [1, 2] : vector<1x1x256xf32> to vector<1xf32>
      %47 = vector.shape_cast %46 : vector<1xf32> to vector<1x1x1xf32>
      %48 = vector.extract %47[0, 0, 0] : f32 from vector<1x1x1xf32>
      %49 = vector.broadcast %48 : f32 to vector<1x1xf32>
      %cst_26 = arith.constant 1.000000e+00 : f32
      %50 = vector.broadcast %cst_26 : f32 to vector<1x1xf32>
      %51 = arith.divf %50, %49 : vector<1x1xf32>
      %52 = vector.broadcast %51 : vector<1x1xf32> to vector<8x256xf32>
      %53 = arith.mulf %43, %52 : vector<8x256xf32>
      %c0_27 = arith.constant 0 : index
      %c0_28 = arith.constant 0 : index
      %54 = vector.load %arg5[%c0_27, %c0_28] : memref<8x8xf32, #tpu.memory_space<vmem>>, vector<8x8xf32>
      %cst_29 = arith.constant dense<0.000000e+00> : vector<8x256xf32>
      %55 = tpu.matmul %54, %53, %cst_29 {dimension_numbers = #tpu.dot_dimension_numbers<[1], [0], [0], [1], [0, 0, 1, 1], [], []>} : vector<8x8xf32>, vector<8x256xf32>, vector<8x256xf32> -> vector<8x256xf32>
      %c0_30 = arith.constant 0 : index
      %c0_31 = arith.constant 0 : index
      %c0_32 = arith.constant 0 : index
      %56 = vector.load %arg2[%c0_30, %c0_31, %c0_32] : memref<1x8x256xf32, #tpu.memory_space<vmem>>, vector<1x8x256xf32>
      %57 = vector.shape_cast %56 : vector<1x8x256xf32> to vector<8x256xf32>
      %58 = arith.addf %55, %57 : vector<8x256xf32>
      %c0_33 = arith.constant 0 : index
      %c0_34 = arith.constant 0 : index
      %c0_35 = arith.constant 0 : index
      %59 = vector.load %arg6[%c0_33, %c0_34, %c0_35] : memref<1x8x256xf32, #tpu.memory_space<vmem>>, vector<1x8x256xf32>
      %60 = vector.shape_cast %59 : vector<1x8x256xf32> to vector<8x256xf32>
      %61 = vector.shape_cast %58 : vector<8x256xf32> to vector<1x8x256xf32>
      tpu.vector_store %arg6[%c0_33, %c0_34, %c0_35], %61 {strides = array<i32>} : memref<1x8x256xf32, #tpu.memory_space<vmem>>, vector<1x8x256xf32>,
    } else {
    }
    return
  }
  func.func @transform_0(%arg0: i32, %arg1: i32) -> (i32, i32, i32) {
    %c0_i32 = arith.constant 0 : i32
    %c0_i32_0 = arith.constant 0 : i32
    %c0_i32_1 = arith.constant 0 : i32
    return %arg0, %c0_i32, %c0_i32_0 : i32, i32, i32
  }
  func.func @transform_1(%arg0: i32, %arg1: i32) -> (i32, i32, i32) {
    %c0_i32 = arith.constant 0 : i32
    %c0_i32_0 = arith.constant 0 : i32
    %c0_i32_1 = arith.constant 0 : i32
    return %arg0, %c0_i32, %c0_i32_0 : i32, i32, i32
  }
  func.func @transform_2(%arg0: i32, %arg1: i32) -> (i32, i32) {
    %c0_i32 = arith.constant 0 : i32
    %c0_i32_0 = arith.constant 0 : i32
    %c0_i32_1 = arith.constant 0 : i32
    return %c0_i32, %c0_i32_0 : i32, i32
  }
  func.func @transform_3(%arg0: i32, %arg1: i32) -> (i32, i32) {
    %c0_i32 = arith.constant 0 : i32
    %c0_i32_0 = arith.constant 0 : i32
    %c0_i32_1 = arith.constant 0 : i32
    return %c0_i32, %c0_i32_0 : i32, i32
  }
  func.func @transform_4(%arg0: i32, %arg1: i32) -> (i32, i32, i32) {
    %c0_i32 = arith.constant 0 : i32
    %c0_i32_0 = arith.constant 0 : i32
    %c0_i32_1 = arith.constant 0 : i32
    return %arg0, %c0_i32, %c0_i32_0 : i32, i32, i32
  }
}

</mosaic_0001>

<llo_original>
// kernel: tpu_custom_call.1
$region0: #{tpu_custom_call.1}
  #allocation0 [shape = 'u32[]', space=smem, size = 0x4, offset = 0x4, fixed_abs, tag = 'smem constant byte address 0x4 - core index']
  #allocation1 [shape = 'u32[72,128]{1,0:T(1,128)}', space=vmem, size = 0x9000, scoped, tag = 'internal scratch']
  #allocation2 [shape = 'f32[8,256]{1,0:T(8,128)}', space=vmem, size = 0x2000, scoped, tag = 'scratch operand']
  #allocation3 [shape = 'f32[1,1]{1,0:T(1,128)}', space=vmem, size = 0x200, scoped, tag = 'scratch operand']
  %s0 = inlined_call_operand.hbm [shape: f32[2,8,256], index: 0, kind: input, shape index: {}]
  %s1 = inlined_call_operand.hbm [shape: f32[2,8,256], index: 1, kind: input, shape index: {}]
  %s2 = inlined_call_operand.vmem [shape: f32[16,8], index: 2, kind: input, shape index: {}]
  %s3 = inlined_call_operand.vmem [shape: f32[8,8], index: 3, kind: input, shape index: {}]
  %s4 = inlined_call_operand.hbm [shape: f32[2,8,256], index: 4, kind: output, shape index: {}]
  %s5 = sld [smem:[#allocation0]]
  $region65: #{tpu_custom_call.1} parent=0
    _
  %s7 = ssub.s32 1, %s5
  %s8 = scalar_select 0, %s7, %s5
  $region1: #{tpu_custom_call.1} parent=0
    #allocation4 [shape = 'u8[16384]{0}', space=vmem, size = 0x4000, scoped, tag = 'input window, operand 0']
    #allocation5 [shape = 's32[2]{0}', space=sflag, size = 0x8, scoped, tag = 'scoped memory for tpu_custom_call.1']
    #allocation6 [shape = 's32[2]{0}', space=sflag, size = 0x8, scoped, tag = 'scoped memory for tpu_custom_call.1']
    #allocation7 [shape = 'u8[16384]{0}', space=vmem, size = 0x4000, scoped, tag = 'input window, operand 1']
    #allocation8 [shape = 's32[2]{0}', space=sflag, size = 0x8, scoped, tag = 'scoped memory for tpu_custom_call.1']
    #allocation9 [shape = 'u8[16384]{0}', space=vmem, size = 0x4000, scoped, tag = 'output window, operand 0']
    %9 = vsyncpa [#allocation5], 0
    %s10 = scalar_lea.sflag [#allocation5], 1
    %11 = vsyncpa %s10, 0
    %12 = vsyncpa [#allocation8], 0
    %s13 = scalar_lea.sflag [#allocation8], 1
    %14 = vsyncpa %s13, 0
    %15 = vsyncpa [#allocation6], 0
    %s16 = scalar_lea.sflag [#allocation6], 1
    %17 = vsyncpa %s16, 0
    loop: start=0, step=1, limit=4
    $region2: #{tpu_custom_call.1} parent=1 // loop_pre_header
      _
    $region3: #{tpu_custom_call.1} parent=1 // loop_header
      %s19 = sphi 0, %s23
      %p20 = scmp.ge.s32.totalorder %s19, 4
      %s26 = sphi 0, %s38
      %s27 = sphi 0, %s34
      %s28 = sphi 0, %s26
      %s29 = sphi 0, %s27
      %s30 = sphi 0, %s28
      %s31 = sphi 0, %s29
      %s41 = sphi 0, %s43
      %s44 = sphi 0, %s41
      %s45 = sphi 0, %s44
      %s61 = sphi 0, %s45
      %s67 = sphi 0, %s69
      %s70 = sphi 0, %s67
      %s71 = sphi 0, %s70
      %s87 = sphi 0, %s71
      %s91 = sphi 0, %s91
      %s93 = sphi 0, %s91
      %s94 = sphi 0, %s93
      %s108 = sphi 0, %s94
      %s112 = sphi 0, %s112
      %s114 = sphi 0, %s112
      %s115 = sphi 0, %s114
      %s129 = sphi 0, %s115
      %s135 = sphi 0, %s137
      %s138 = sphi 0, %s135
      %s139 = sphi 0, %s138
      %s155 = sphi 0, %s139
    $region4: #{tpu_custom_call.1} parent=1 // loop_header_branch
      %22 = sbr.rel (%p20) target = $region8
    $region5: #{tpu_custom_call.1} parent=1 // loop_body
      %s24 = ssub.s32 %s19, 1
      %s25 = ssub.s32 %s19, 2
      %s32 = sadd.s32 1, %s27
      %p33 = scmp.ge.s32.totalorder %s32, 1
      %s34 = scalar_select %p33, 0, %s32
      %s35 = sadd.s32 1, %s26
      %s36 = scalar_select %p33, %s35, %s26
      %p37 = scmp.ge.s32.totalorder %s36, 2
      %s38 = scalar_select %p37, 0, %s36
      %s39 = ssub.s32 %s26, %s38
      %p40 = scmp.eq.s32.totalorder %s39, 0
      %s42 = sadd.s32 %s41, 1
      %s43 = scalar_select %p40, %s41, %s42
      %p46 = pneg %p40
      %p47 = scmp.eq.s32.totalorder %s19, 1
      %p48 = por %p46, %p47
      %p49 = scmp.ne.s32.totalorder %s41, %s44
      %p50 = scmp.eq.s32.totalorder %s19, 0
      %p51 = por %p49, %p50
      %p52 = scmp.ne.s32.totalorder %s41, %s44
      %p53 = scmp.eq.s32.totalorder %s24, 1
      %p54 = por %p52, %p53
      %p55 = scmp.ne.s32.totalorder %s44, %s45
      %p56 = scmp.eq.s32.totalorder %s24, 0
      %p57 = por %p55, %p56
      %p58 = scmp.ne.s32.totalorder %s44, %s45
      %p59 = scmp.eq.s32.totalorder %s25, 1
      %p60 = por %p58, %p59
      %p62 = scmp.ne.s32.totalorder %s45, %s61
      %p63 = scmp.eq.s32.totalorder %s25, 0
      %p64 = por %p62, %p63
      %s65 = ssub.s32 %s26, %s38
      %p66 = scmp.eq.s32.totalorder %s65, 0
      %s68 = sadd.s32 %s67, 1
      %s69 = scalar_select %p66, %s67, %s68
      %p72 = pneg %p66
      %p73 = scmp.eq.s32.totalorder %s19, 1
      %p74 = por %p72, %p73
      %p75 = scmp.ne.s32.totalorder %s67, %s70
      %p76 = scmp.eq.s32.totalorder %s19, 0
      %p77 = por %p75, %p76
      %p78 = scmp.ne.s32.totalorder %s67, %s70
      %p79 = scmp.eq.s32.totalorder %s24, 1
      %p80 = por %p78, %p79
      %p81 = scmp.ne.s32.totalorder %s70, %s71
      %p82 = scmp.eq.s32.totalorder %s24, 0
      %p83 = por %p81, %p82
      %p84 = scmp.ne.s32.totalorder %s70, %s71
      %p85 = scmp.eq.s32.totalorder %s25, 1
      %p86 = por %p84, %p85
      %p88 = scmp.ne.s32.totalorder %s71, %s87
      %p89 = scmp.eq.s32.totalorder %s25, 0
      %p90 = por %p88, %p89
      %s92 = sadd.s32 %s91, 1
      %p95 = scmp.eq.s32.totalorder %s19, 1
      %p96 = scmp.ne.s32.totalorder %s91, %s93
      %p97 = scmp.eq.s32.totalorder %s19, 0
      %p98 = por %p96, %p97
      %p99 = scmp.ne.s32.totalorder %s91, %s93
      %p100 = scmp.eq.s32.totalorder %s24, 1
      %p101 = por %p99, %p100
      %p102 = scmp.ne.s32.totalorder %s93, %s94
      %p103 = scmp.eq.s32.totalorder %s24, 0
      %p104 = por %p102, %p103
      %p105 = scmp.ne.s32.totalorder %s93, %s94
      %p106 = scmp.eq.s32.totalorder %s25, 1
      %p107 = por %p105, %p106
      %p109 = scmp.ne.s32.totalorder %s94, %s108
      %p110 = scmp.eq.s32.totalorder %s25, 0
      %p111 = por %p109, %p110
      %s113 = sadd.s32 %s112, 1
      %p116 = scmp.eq.s32.totalorder %s19, 1
      %p117 = scmp.ne.s32.totalorder %s112, %s114
      %p118 = scmp.eq.s32.totalorder %s19, 0
      %p119 = por %p117, %p118
      %p120 = scmp.ne.s32.totalorder %s112, %s114
      %p121 = scmp.eq.s32.totalorder %s24, 1
      %p122 = por %p120, %p121
      %p123 = scmp.ne.s32.totalorder %s114, %s115
      %p124 = scmp.eq.s32.totalorder %s24, 0
      %p125 = por %p123, %p124
      %p126 = scmp.ne.s32.totalorder %s114, %s115
      %p127 = scmp.eq.s32.totalorder %s25, 1
      %p128 = por %p126, %p127
      %p130 = scmp.ne.s32.totalorder %s115, %s129
      %p131 = scmp.eq.s32.totalorder %s25, 0
      %p132 = por %p130, %p131
      %s133 = ssub.s32 %s26, %s38
      %p134 = scmp.eq.s32.totalorder %s133, 0
      %s136 = sadd.s32 %s135, 1
      %s137 = scalar_select %p134, %s135, %s136
      %p140 = pneg %p134
      %p141 = scmp.eq.s32.totalorder %s19, 1
      %p142 = por %p140, %p141
      %p143 = scmp.ne.s32.totalorder %s135, %s138
      %p144 = scmp.eq.s32.totalorder %s19, 0
      %p145 = por %p143, %p144
      %p146 = scmp.ne.s32.totalorder %s135, %s138
      %p147 = scmp.eq.s32.totalorder %s24, 1
      %p148 = por %p146, %p147
      %p149 = scmp.ne.s32.totalorder %s138, %s139
      %p150 = scmp.eq.s32.totalorder %s24, 0
      %p151 = por %p149, %p150
      %p152 = scmp.ne.s32.totalorder %s138, %s139
      %p153 = scmp.eq.s32.totalorder %s25, 1
      %p154 = por %p152, %p153
      %p156 = scmp.ne.s32.totalorder %s139, %s155
      %p157 = scmp.eq.s32.totalorder %s25, 0
      %p158 = por %p156, %p157
      %p159 = scmp.le.s32.totalorder 1, %s19
      %p160 = scmp.lt.s32.totalorder %s19, 3
      %p161 = pnand %p159, %p160
      %p162 = pneg %p161
      // Predicated region
      $region9: #{tpu_custom_call.1} parent=5 // pred_check
        _
      $region10: #{tpu_custom_call.1} parent=5 // pred_check_branch
        %164 = sbr.rel (%p161) target = $region12
      $region11: #{tpu_custom_call.1} parent=5 // pred_region
        %s165 = ssub.s32 %s19, 1
        // Predicated region
        $region13: #{tpu_custom_call.1} parent=11 // pred_check
          %p166 = pneg %p104
        $region14: #{tpu_custom_call.1} parent=11 // pred_check_branch
          %168 = sbr.rel (%p166) target = $region16
        $region15: #{tpu_custom_call.1} parent=11 // pred_region
          _
        $region16: #{tpu_custom_call.1} parent=11 // pred_fallthru
          _
        // Predicated region
        $region17: #{tpu_custom_call.1} parent=11 // pred_check
          %p169 = pneg %p125
        $region18: #{tpu_custom_call.1} parent=11 // pred_check_branch
          %171 = sbr.rel (%p169) target = $region20
        $region19: #{tpu_custom_call.1} parent=11 // pred_region
          _
        $region20: #{tpu_custom_call.1} parent=11 // pred_fallthru
          _
      $region12: #{tpu_custom_call.1} parent=5 // pred_fallthru
        _
      %p172 = scmp.lt.s32.totalorder %s19, 2
      // Predicated region
      $region21: #{tpu_custom_call.1} parent=5 // pred_check
        %p173 = pneg %p172
      $region22: #{tpu_custom_call.1} parent=5 // pred_check_branch
        %175 = sbr.rel (%p173) target = $region24
      $region23: #{tpu_custom_call.1} parent=5 // pred_region
        // Predicated region
        $region25: #{tpu_custom_call.1} parent=23 // pred_check
          %p176 = pneg %p51
        $region26: #{tpu_custom_call.1} parent=23 // pred_check_branch
          %178 = sbr.rel (%p176) target = $region28
        $region27: #{tpu_custom_call.1} parent=23 // pred_region
          %s179 = sand.u32 %s41, 1
          %s180 = scalar_lea.sflag [#allocation5], %s179
          %s181 = sand.u32 %s41, 1
          %s182 = smul.addr %s181, 16
          %s183 = scalar_lea.vmem [#allocation4], %s182
          %185 = vsyncadd %s180, 0
          %s186 = smul.addr %s26, 2
          %s187 = smul.addr %s186, 8
          %s188 = scalar_lea.hbm %s0, %s187
          %s190 = sshll.u32 %s188, 4
          %s191 = int_to_ptr.hbm [resolvable:$true] %s190
          %s192 = sshll.u32 %s183, 4
          %s193 = int_to_ptr.vmem [resolvable:$true] %s192
          %195 = dma.hbm_to_vmem [thread:$0]  %s191, 256, %s193, %s180
        $region28: #{tpu_custom_call.1} parent=23 // pred_fallthru
          _
        // Predicated region
        $region29: #{tpu_custom_call.1} parent=23 // pred_check
          %p196 = pneg %p77
        $region30: #{tpu_custom_call.1} parent=23 // pred_check_branch
          %198 = sbr.rel (%p196) target = $region32
        $region31: #{tpu_custom_call.1} parent=23 // pred_region
          %s199 = sand.u32 %s67, 1
          %s200 = scalar_lea.sflag [#allocation8], %s199
          %s201 = sand.u32 %s67, 1
          %s202 = smul.addr %s201, 16
          %s203 = scalar_lea.vmem [#allocation7], %s202
          %205 = vsyncadd %s200, 0
          %s206 = smul.addr %s26, 2
          %s207 = smul.addr %s206, 8
          %s208 = scalar_lea.hbm %s1, %s207
          %s210 = sshll.u32 %s208, 4
          %s211 = int_to_ptr.hbm [resolvable:$true] %s210
          %s212 = sshll.u32 %s203, 4
          %s213 = int_to_ptr.vmem [resolvable:$true] %s212
          %215 = dma.hbm_to_vmem [thread:$0]  %s211, 256, %s213, %s200
        $region32: #{tpu_custom_call.1} parent=23 // pred_fallthru
          _
      $region24: #{tpu_custom_call.1} parent=5 // pred_fallthru
        _
      %p216 = scmp.le.s32.totalorder 1, %s19
      %p217 = scmp.lt.s32.totalorder %s19, 3
      %p218 = pnand %p216, %p217
      %p219 = pneg %p218
      // Predicated region
      $region33: #{tpu_custom_call.1} parent=5 // pred_check
        _
      $region34: #{tpu_custom_call.1} parent=5 // pred_check_branch
        %221 = sbr.rel (%p218) target = $region36
      $region35: #{tpu_custom_call.1} parent=5 // pred_region
        %s222 = ssub.s32 %s19, 1
        %s223 = sand.u32 %s44, 1
        %s224 = scalar_lea.sflag [#allocation5], %s223
        %s225 = sand.u32 %s44, 1
        %s226 = smul.addr %s225, 16
        %s227 = scalar_lea.vmem [#allocation4], %s226
        // Predicated region
        $region37: #{tpu_custom_call.1} parent=35 // pred_check
          %p228 = pneg %p57
        $region38: #{tpu_custom_call.1} parent=35 // pred_check_branch
          %230 = sbr.rel (%p228) target = $region40
        $region39: #{tpu_custom_call.1} parent=35 // pred_region
          %232 = dma.done %s224, 256
        $region40: #{tpu_custom_call.1} parent=35 // pred_fallthru
          _
        %s233 = sand.u32 %s70, 1
        %s234 = scalar_lea.sflag [#allocation8], %s233
        %s235 = sand.u32 %s70, 1
        %s236 = smul.addr %s235, 16
        %s237 = scalar_lea.vmem [#allocation7], %s236
        // Predicated region
        $region41: #{tpu_custom_call.1} parent=35 // pred_check
          %p238 = pneg %p83
        $region42: #{tpu_custom_call.1} parent=35 // pred_check_branch
          %240 = sbr.rel (%p238) target = $region44
        $region43: #{tpu_custom_call.1} parent=35 // pred_region
          %242 = dma.done %s234, 256
        $region44: #{tpu_custom_call.1} parent=35 // pred_fallthru
          _
        %s243 = sand.u32 %s44, 1
        %s244 = scalar_lea.sflag [#allocation5], %s243
        %s245 = sand.u32 %s44, 1
        %s246 = smul.addr %s245, 16
        %s247 = scalar_lea.vmem [#allocation4], %s246
        %p248 = pneg %p57
        %p249 = pneg %p54
        %s250 = sand.u32 %s70, 1
        %s251 = scalar_lea.sflag [#allocation8], %s250
        %s252 = sand.u32 %s70, 1
        %s253 = smul.addr %s252, 16
        %s254 = scalar_lea.vmem [#allocation7], %s253
        %p255 = pneg %p83
        %p256 = pneg %p80
        %p257 = pneg %p104
        %p258 = pneg %p101
        %p259 = pneg %p125
        %p260 = pneg %p122
        %p261 = pneg %p151
        %p262 = pneg %p148
        %s263 = sand.u32 %s138, 1
        %s264 = scalar_lea.sflag [#allocation6], %s263
        %s265 = sand.u32 %s138, 1
        %s266 = smul.addr %s265, 16
        %s267 = scalar_lea.vmem [#allocation9], %s266
        %p268 = scmp.eq.s32.totalorder %s29, 0
        // Predicated region
        $region45: #{tpu_custom_call.1} parent=35 // pred_check
          %p269 = pneg %p268
        $region46: #{tpu_custom_call.1} parent=35 // pred_check_branch
          %271 = sbr.rel (%p269) target = $region48
        $region47: #{tpu_custom_call.1} parent=35 // pred_region
          %272 = vst [vmem:[#allocation2] sm:$0xff] 0.0
          %273 = vst [vmem:[#allocation2 + $0x8] sm:$0xff] 0.0
          %vm274 = vcmask 0
          %275 = vst.msk [vmem:[#allocation3] sm:$0x1] %vm274, -inf
        $region48: #{tpu_custom_call.1} parent=35 // pred_fallthru
          _
        %s276 = smul.u32 %s29, 256
        %s277 = sshra.s32 %s276, 7
        %s278 = sand.u32 %s276, 127
        %s279 = smul.addr %s277, 8
        %s280 = scalar_lea.vmem %s227, %s279 [#allocation4]
        %v281 = vld [vmem:[%s280] sm:$0xff]
        %v282 = vld [vmem:[%s280 + $0x8] sm:$0xff]
        %v283 = vld [vmem:[%s2] sm:$0xff]
        %v284 = vld [vmem:[%s2 + $0x8] sm:$0xff]
        %vm285 = vcmask 64512
        %v287 = vsel %vm285, %v283, 0
        %v290 = vsel %vm285, %v284, 0
        %292 = vmatpush.msra.mxu0 0.0
        %293 = vmatpush.msra.mxu0 0.0
        %294 = vmatpush.msra.mxu0 0.0
        %295 = vmatpush.msra.mxu0 0.0
        %296 = vmatpush.msra.mxu0 0.0
        %297 = vmatpush.msra.mxu0 0.0
        %298 = vmatpush.msra.mxu0 0.0
        %299 = vmatpush.msra.mxu0 0.0
        %300 = vmatpush.msra.mxu0 0.0
        %301 = vmatpush.msra.mxu0 0.0
        %302 = vmatpush.msra.mxu0 0.0
        %303 = vmatpush.msra.mxu0 0.0
        %304 = vmatpush.msra.mxu0 0.0
        %305 = vmatpush.msra.mxu0 0.0
        %306 = vmatpush.msra.mxu0 0.0
        %307 = vmatpush.msra.mxu0 %v281
        %308 = vmatmul.f32.gmra.mxu0 %v287
        %v309 = vpop.f32.mrf.mxu0
        %v310 = vadd.f32 0.0, %v309
        %311 = vmatmul.f32.gmra.mxu0 %v290
        %v312 = vpop.f32.mrf.mxu0
        %v313 = vadd.f32 0.0, %v312
        %314 = vdwg.mxu0
        %315 = vmatpush.msra.mxu0 0.0
        %316 = vmatpush.msra.mxu0 0.0
        %317 = vmatpush.msra.mxu0 0.0
        %318 = vmatpush.msra.mxu0 0.0
        %319 = vmatpush.msra.mxu0 0.0
        %320 = vmatpush.msra.mxu0 0.0
        %321 = vmatpush.msra.mxu0 0.0
        %322 = vmatpush.msra.mxu0 0.0
        %323 = vmatpush.msra.mxu0 0.0
        %324 = vmatpush.msra.mxu0 0.0
        %325 = vmatpush.msra.mxu0 0.0
        %326 = vmatpush.msra.mxu0 0.0
        %327 = vmatpush.msra.mxu0 0.0
        %328 = vmatpush.msra.mxu0 0.0
        %329 = vmatpush.msra.mxu0 0.0
        %330 = vmatpush.msra.mxu0 %v282
        %331 = vmatmul.f32.gmra.mxu0 %v287
        %v332 = vpop.f32.mrf.mxu0
        %v333 = vadd.f32 0.0, %v332
        %334 = vmatmul.f32.gmra.mxu0 %v290
        %v335 = vpop.f32.mrf.mxu0
        %v336 = vadd.f32 0.0, %v335
        %337 = vdwg.mxu0
        %v338 = vlaneseq
        %v339 = vshrl.u32 %v338, 7
        %vm340 = vcmp.eq.s32.totalorder %v339, 4
        %v341 = vsel %vm340, 1.0, %v313
        %v342 = vsel %vm340, 1.0, %v336
        %v343 = vld [vmem:[%s237] sm:$0xff]
        %v344 = vld [vmem:[%s237 + $0x8] sm:$0xff]
        %345 = vxpose.xlu0.b32.start [1/16] %v310, 128
        %346 = vxpose.xlu0.b32.cont [2/16] 0.0, 128
        %347 = vxpose.xlu0.b32.cont [3/16] 0.0, 128
        %348 = vxpose.xlu0.b32.cont [4/16] 0.0, 128
        %349 = vxpose.xlu0.b32.cont [5/16] 0.0, 128
        %350 = vxpose.xlu0.b32.cont [6/16] 0.0, 128
        %351 = vxpose.xlu0.b32.cont [7/16] 0.0, 128
        %352 = vxpose.xlu0.b32.cont [8/16] 0.0, 128
        %353 = vxpose.xlu0.b32.cont [9/16] 0.0, 128
        %354 = vxpose.xlu0.b32.cont [10/16] 0.0, 128
        %355 = vxpose.xlu0.b32.cont [11/16] 0.0, 128
        %356 = vxpose.xlu0.b32.cont [12/16] 0.0, 128
        %357 = vxpose.xlu0.b32.cont [13/16] 0.0, 128
        %358 = vxpose.xlu0.b32.cont [14/16] 0.0, 128
        %359 = vxpose.xlu0.b32.cont [15/16] 0.0, 128
        %360 = vxpose.xlu0.b32.end [16/16] 0.0, 128
        %v361 = vpop.trf.xlu0
        %v362 = vpop.trf.xlu0
        %v363 = vpop.trf.xlu0
        %v364 = vpop.trf.xlu0
        %v365 = vpop.trf.xlu0
        %v366 = vpop.trf.xlu0
        %v367 = vpop.trf.xlu0
        %v368 = vpop.trf.xlu0
        %v369 = vpop.trf.xlu0
        %v370 = vpop.trf.xlu0
        %v371 = vpop.trf.xlu0
        %v372 = vpop.trf.xlu0
        %v373 = vpop.trf.xlu0
        %v374 = vpop.trf.xlu0
        %v375 = vpop.trf.xlu0
        %v376 = vpop.trf.xlu0
        %377 = vxpose.xlu0.b32.start [1/16] %v333, 128
        %378 = vxpose.xlu0.b32.cont [2/16] 0.0, 128
        %379 = vxpose.xlu0.b32.cont [3/16] 0.0, 128
        %380 = vxpose.xlu0.b32.cont [4/16] 0.0, 128
        %381 = vxpose.xlu0.b32.cont [5/16] 0.0, 128
        %382 = vxpose.xlu0.b32.cont [6/16] 0.0, 128
        %383 = vxpose.xlu0.b32.cont [7/16] 0.0, 128
        %384 = vxpose.xlu0.b32.cont [8/16] 0.0, 128
        %385 = vxpose.xlu0.b32.cont [9/16] 0.0, 128
        %386 = vxpose.xlu0.b32.cont [10/16] 0.0, 128
        %387 = vxpose.xlu0.b32.cont [11/16] 0.0, 128
        %388 = vxpose.xlu0.b32.cont [12/16] 0.0, 128
        %389 = vxpose.xlu0.b32.cont [13/16] 0.0, 128
        %390 = vxpose.xlu0.b32.cont [14/16] 0.0, 128
        %391 = vxpose.xlu0.b32.cont [15/16] 0.0, 128
        %392 = vxpose.xlu0.b32.end [16/16] 0.0, 128
        %v393 = vpop.trf.xlu0
        %v394 = vpop.trf.xlu0
        %v395 = vpop.trf.xlu0
        %v396 = vpop.trf.xlu0
        %v397 = vpop.trf.xlu0
        %v398 = vpop.trf.xlu0
        %v399 = vpop.trf.xlu0
        %v400 = vpop.trf.xlu0
        %v401 = vpop.trf.xlu0
        %v402 = vpop.trf.xlu0
        %v403 = vpop.trf.xlu0
        %v404 = vpop.trf.xlu0
        %v405 = vpop.trf.xlu0
        %v406 = vpop.trf.xlu0
        %v407 = vpop.trf.xlu0
        %v408 = vpop.trf.xlu0
        %v410 = vsel %vm285, %v361, 0
        %v413 = vsel %vm285, %v362, 0
        %v416 = vsel %vm285, %v363, 0
        %v419 = vsel %vm285, %v364, 0
        %v422 = vsel %vm285, %v365, 0
        %v425 = vsel %vm285, %v366, 0
        %v428 = vsel %vm285, %v367, 0
        %v431 = vsel %vm285, %v368, 0
        %v434 = vsel %vm285, %v369, 0
        %v437 = vsel %vm285, %v370, 0
        %v440 = vsel %vm285, %v371, 0
        %v443 = vsel %vm285, %v372, 0
        %v446 = vsel %vm285, %v373, 0
        %v449 = vsel %vm285, %v374, 0
        %v452 = vsel %vm285, %v375, 0
        %v455 = vsel %vm285, %v376, 0
        %v458 = vsel %vm285, %v393, 0
        %v461 = vsel %vm285, %v394, 0
        %v464 = vsel %vm285, %v395, 0
        %v467 = vsel %vm285, %v396, 0
        %v470 = vsel %vm285, %v397, 0
        %v473 = vsel %vm285, %v398, 0
        %v476 = vsel %vm285, %v399, 0
        %v479 = vsel %vm285, %v400, 0
        %v482 = vsel %vm285, %v401, 0
        %v485 = vsel %vm285, %v402, 0
        %v488 = vsel %vm285, %v403, 0
        %v491 = vsel %vm285, %v404, 0
        %v494 = vsel %vm285, %v405, 0
        %v497 = vsel %vm285, %v406, 0
        %v500 = vsel %vm285, %v407, 0
        %v503 = vsel %vm285, %v408, 0
        %505 = vmatpush.msra.mxu0 0.0
        %506 = vmatpush.msra.mxu0 0.0
        %507 = vmatpush.msra.mxu0 0.0
        %508 = vmatpush.msra.mxu0 0.0
        %509 = vmatpush.msra.mxu0 0.0
        %510 = vmatpush.msra.mxu0 0.0
        %511 = vmatpush.msra.mxu0 0.0
        %512 = vmatpush.msra.mxu0 0.0
        %513 = vmatpush.msra.mxu0 0.0
        %514 = vmatpush.msra.mxu0 0.0
        %515 = vmatpush.msra.mxu0 0.0
        %516 = vmatpush.msra.mxu0 0.0
        %517 = vmatpush.msra.mxu0 0.0
        %518 = vmatpush.msra.mxu0 0.0
        %519 = vmatpush.msra.mxu0 0.0
        %520 = vmatpush.msra.mxu0 %v343
        %521 = vmatmul.f32.gmra.mxu0 %v410
        %v522 = vpop.f32.mrf.mxu0
        %v523 = vadd.f32 0.0, %v522
        %524 = vmatmul.f32.gmra.mxu0 %v413
        %v525 = vpop.f32.mrf.mxu0
        %v526 = vadd.f32 0.0, %v525
        %527 = vmatmul.f32.gmra.mxu0 %v416
        %v528 = vpop.f32.mrf.mxu0
        %v529 = vadd.f32 0.0, %v528
        %530 = vmatmul.f32.gmra.mxu0 %v419
        %v531 = vpop.f32.mrf.mxu0
        %v532 = vadd.f32 0.0, %v531
        %533 = vmatmul.f32.gmra.mxu0 %v422
        %v534 = vpop.f32.mrf.mxu0
        %v535 = vadd.f32 0.0, %v534
        %536 = vmatmul.f32.gmra.mxu0 %v425
        %v537 = vpop.f32.mrf.mxu0
        %v538 = vadd.f32 0.0, %v537
        %539 = vmatmul.f32.gmra.mxu0 %v428
        %v540 = vpop.f32.mrf.mxu0
        %v541 = vadd.f32 0.0, %v540
        %542 = vmatmul.f32.gmra.mxu0 %v431
        %v543 = vpop.f32.mrf.mxu0
        %v544 = vadd.f32 0.0, %v543
        %545 = vmatmul.f32.gmra.mxu0 %v434
        %v546 = vpop.f32.mrf.mxu0
        %v547 = vadd.f32 0.0, %v546
        %548 = vmatmul.f32.gmra.mxu0 %v437
        %v549 = vpop.f32.mrf.mxu0
        %v550 = vadd.f32 0.0, %v549
        %551 = vmatmul.f32.gmra.mxu0 %v440
        %v552 = vpop.f32.mrf.mxu0
        %v553 = vadd.f32 0.0, %v552
        %554 = vmatmul.f32.gmra.mxu0 %v443
        %v555 = vpop.f32.mrf.mxu0
        %v556 = vadd.f32 0.0, %v555
        %557 = vmatmul.f32.gmra.mxu0 %v446
        %v558 = vpop.f32.mrf.mxu0
        %v559 = vadd.f32 0.0, %v558
        %560 = vmatmul.f32.gmra.mxu0 %v449
        %v561 = vpop.f32.mrf.mxu0
        %v562 = vadd.f32 0.0, %v561
        %563 = vmatmul.f32.gmra.mxu0 %v452
        %v564 = vpop.f32.mrf.mxu0
        %v565 = vadd.f32 0.0, %v564
        %566 = vmatmul.f32.gmra.mxu0 %v455
        %v567 = vpop.f32.mrf.mxu0
        %v568 = vadd.f32 0.0, %v567
        %569 = vmatmul.f32.gmra.mxu0 %v458
        %v570 = vpop.f32.mrf.mxu0
        %v571 = vadd.f32 0.0, %v570
        %572 = vmatmul.f32.gmra.mxu0 %v461
        %v573 = vpop.f32.mrf.mxu0
        %v574 = vadd.f32 0.0, %v573
        %575 = vmatmul.f32.gmra.mxu0 %v464
        %v576 = vpop.f32.mrf.mxu0
        %v577 = vadd.f32 0.0, %v576
        %578 = vmatmul.f32.gmra.mxu0 %v467
        %v579 = vpop.f32.mrf.mxu0
        %v580 = vadd.f32 0.0, %v579
        %581 = vmatmul.f32.gmra.mxu0 %v470
        %v582 = vpop.f32.mrf.mxu0
        %v583 = vadd.f32 0.0, %v582
        %584 = vmatmul.f32.gmra.mxu0 %v473
        %v585 = vpop.f32.mrf.mxu0
        %v586 = vadd.f32 0.0, %v585
        %587 = vmatmul.f32.gmra.mxu0 %v476
        %v588 = vpop.f32.mrf.mxu0
        %v589 = vadd.f32 0.0, %v588
        %590 = vmatmul.f32.gmra.mxu0 %v479
        %v591 = vpop.f32.mrf.mxu0
        %v592 = vadd.f32 0.0, %v591
        %593 = vmatmul.f32.gmra.mxu0 %v482
        %v594 = vpop.f32.mrf.mxu0
        %v595 = vadd.f32 0.0, %v594
        %596 = vmatmul.f32.gmra.mxu0 %v485
        %v597 = vpop.f32.mrf.mxu0
        %v598 = vadd.f32 0.0, %v597
        %599 = vmatmul.f32.gmra.mxu0 %v488
        %v600 = vpop.f32.mrf.mxu0
        %v601 = vadd.f32 0.0, %v600
        %602 = vmatmul.f32.gmra.mxu0 %v491
        %v603 = vpop.f32.mrf.mxu0
        %v604 = vadd.f32 0.0, %v603
        %605 = vmatmul.f32.gmra.mxu0 %v494
        %v606 = vpop.f32.mrf.mxu0
        %v607 = vadd.f32 0.0, %v606
        %608 = vmatmul.f32.gmra.mxu0 %v497
        %v609 = vpop.f32.mrf.mxu0
        %v610 = vadd.f32 0.0, %v609
        %611 = vmatmul.f32.gmra.mxu0 %v500
        %v612 = vpop.f32.mrf.mxu0
        %v613 = vadd.f32 0.0, %v612
        %614 = vmatmul.f32.gmra.mxu0 %v503
        %v615 = vpop.f32.mrf.mxu0
        %v616 = vadd.f32 0.0, %v615
        %617 = vdwg.mxu0
        %618 = vmatpush.msra.mxu0 0.0
        %619 = vmatpush.msra.mxu0 0.0
        %620 = vmatpush.msra.mxu0 0.0
        %621 = vmatpush.msra.mxu0 0.0
        %622 = vmatpush.msra.mxu0 0.0
        %623 = vmatpush.msra.mxu0 0.0
        %624 = vmatpush.msra.mxu0 0.0
        %625 = vmatpush.msra.mxu0 0.0
        %626 = vmatpush.msra.mxu0 0.0
        %627 = vmatpush.msra.mxu0 0.0
        %628 = vmatpush.msra.mxu0 0.0
        %629 = vmatpush.msra.mxu0 0.0
        %630 = vmatpush.msra.mxu0 0.0
        %631 = vmatpush.msra.mxu0 0.0
        %632 = vmatpush.msra.mxu0 0.0
        %633 = vmatpush.msra.mxu0 %v344
        %634 = vmatmul.f32.gmra.mxu0 %v410
        %v635 = vpop.f32.mrf.mxu0
        %v636 = vadd.f32 0.0, %v635
        %637 = vmatmul.f32.gmra.mxu0 %v413
        %v638 = vpop.f32.mrf.mxu0
        %v639 = vadd.f32 0.0, %v638
        %640 = vmatmul.f32.gmra.mxu0 %v416
        %v641 = vpop.f32.mrf.mxu0
        %v642 = vadd.f32 0.0, %v641
        %643 = vmatmul.f32.gmra.mxu0 %v419
        %v644 = vpop.f32.mrf.mxu0
        %v645 = vadd.f32 0.0, %v644
        %646 = vmatmul.f32.gmra.mxu0 %v422
        %v647 = vpop.f32.mrf.mxu0
        %v648 = vadd.f32 0.0, %v647
        %649 = vmatmul.f32.gmra.mxu0 %v425
        %v650 = vpop.f32.mrf.mxu0
        %v651 = vadd.f32 0.0, %v650
        %652 = vmatmul.f32.gmra.mxu0 %v428
        %v653 = vpop.f32.mrf.mxu0
        %v654 = vadd.f32 0.0, %v653
        %655 = vmatmul.f32.gmra.mxu0 %v431
        %v656 = vpop.f32.mrf.mxu0
        %v657 = vadd.f32 0.0, %v656
        %658 = vmatmul.f32.gmra.mxu0 %v434
        %v659 = vpop.f32.mrf.mxu0
        %v660 = vadd.f32 0.0, %v659
        %661 = vmatmul.f32.gmra.mxu0 %v437
        %v662 = vpop.f32.mrf.mxu0
        %v663 = vadd.f32 0.0, %v662
        %664 = vmatmul.f32.gmra.mxu0 %v440
        %v665 = vpop.f32.mrf.mxu0
        %v666 = vadd.f32 0.0, %v665
        %667 = vmatmul.f32.gmra.mxu0 %v443
        %v668 = vpop.f32.mrf.mxu0
        %v669 = vadd.f32 0.0, %v668
        %670 = vmatmul.f32.gmra.mxu0 %v446
        %v671 = vpop.f32.mrf.mxu0
        %v672 = vadd.f32 0.0, %v671
        %673 = vmatmul.f32.gmra.mxu0 %v449
        %v674 = vpop.f32.mrf.mxu0
        %v675 = vadd.f32 0.0, %v674
        %676 = vmatmul.f32.gmra.mxu0 %v452
        %v677 = vpop.f32.mrf.mxu0
        %v678 = vadd.f32 0.0, %v677
        %679 = vmatmul.f32.gmra.mxu0 %v455
        %v680 = vpop.f32.mrf.mxu0
        %v681 = vadd.f32 0.0, %v680
        %682 = vmatmul.f32.gmra.mxu0 %v458
        %v683 = vpop.f32.mrf.mxu0
        %v684 = vadd.f32 0.0, %v683
        %685 = vmatmul.f32.gmra.mxu0 %v461
        %v686 = vpop.f32.mrf.mxu0
        %v687 = vadd.f32 0.0, %v686
        %688 = vmatmul.f32.gmra.mxu0 %v464
        %v689 = vpop.f32.mrf.mxu0
        %v690 = vadd.f32 0.0, %v689
        %691 = vmatmul.f32.gmra.mxu0 %v467
        %v692 = vpop.f32.mrf.mxu0
        %v693 = vadd.f32 0.0, %v692
        %694 = vmatmul.f32.gmra.mxu0 %v470
        %v695 = vpop.f32.mrf.mxu0
        %v696 = vadd.f32 0.0, %v695
        %697 = vmatmul.f32.gmra.mxu0 %v473
        %v698 = vpop.f32.mrf.mxu0
        %v699 = vadd.f32 0.0, %v698
        %700 = vmatmul.f32.gmra.mxu0 %v476
        %v701 = vpop.f32.mrf.mxu0
        %v702 = vadd.f32 0.0, %v701
        %703 = vmatmul.f32.gmra.mxu0 %v479
        %v704 = vpop.f32.mrf.mxu0
        %v705 = vadd.f32 0.0, %v704
        %706 = vmatmul.f32.gmra.mxu0 %v482
        %v707 = vpop.f32.mrf.mxu0
        %v708 = vadd.f32 0.0, %v707
        %709 = vmatmul.f32.gmra.mxu0 %v485
        %v710 = vpop.f32.mrf.mxu0
        %v711 = vadd.f32 0.0, %v710
        %712 = vmatmul.f32.gmra.mxu0 %v488
        %v713 = vpop.f32.mrf.mxu0
        %v714 = vadd.f32 0.0, %v713
        %715 = vmatmul.f32.gmra.mxu0 %v491
        %v716 = vpop.f32.mrf.mxu0
        %v717 = vadd.f32 0.0, %v716
        %718 = vmatmul.f32.gmra.mxu0 %v494
        %v719 = vpop.f32.mrf.mxu0
        %v720 = vadd.f32 0.0, %v719
        %721 = vmatmul.f32.gmra.mxu0 %v497
        %v722 = vpop.f32.mrf.mxu0
        %v723 = vadd.f32 0.0, %v722
        %724 = vmatmul.f32.gmra.mxu0 %v500
        %v725 = vpop.f32.mrf.mxu0
        %v726 = vadd.f32 0.0, %v725
        %727 = vmatmul.f32.gmra.mxu0 %v503
        %v728 = vpop.f32.mrf.mxu0
        %v729 = vadd.f32 0.0, %v728
        %730 = vdwg.mxu0
        %v731 = vld [vmem:[#allocation3] sm:$0x1]
        %v732 = vmax.f32 %v523, %v529
        %v733 = vmax.f32 %v636, %v642
        %v734 = vmax.f32 %v526, %v532
        %v735 = vmax.f32 %v639, %v645
        %v736 = vmax.f32 %v732, %v535
        %v737 = vmax.f32 %v733, %v648
        %v738 = vmax.f32 %v734, %v538
        %v739 = vmax.f32 %v735, %v651
        %v740 = vmax.f32 %v736, %v541
        %v741 = vmax.f32 %v737, %v654
        %v742 = vmax.f32 %v738, %v544
        %v743 = vmax.f32 %v739, %v657
        %v744 = vmax.f32 %v740, %v547
        %v745 = vmax.f32 %v741, %v660
        %v746 = vmax.f32 %v742, %v550
        %v747 = vmax.f32 %v743, %v663
        %v748 = vmax.f32 %v744, %v553
        %v749 = vmax.f32 %v745, %v666
        %v750 = vmax.f32 %v746, %v556
        %v751 = vmax.f32 %v747, %v669
        %v752 = vmax.f32 %v748, %v559
        %v753 = vmax.f32 %v749, %v672
        %v754 = vmax.f32 %v750, %v562
        %v755 = vmax.f32 %v751, %v675
        %v756 = vmax.f32 %v752, %v565
        %v757 = vmax.f32 %v753, %v678
        %v758 = vmax.f32 %v754, %v568
        %v759 = vmax.f32 %v755, %v681
        %v760 = vmax.f32 %v756, %v571
        %v761 = vmax.f32 %v757, %v684
        %v762 = vmax.f32 %v758, %v574
        %v763 = vmax.f32 %v759, %v687
        %v764 = vmax.f32 %v760, %v577
        %v765 = vmax.f32 %v761, %v690
        %v766 = vmax.f32 %v762, %v580
        %v767 = vmax.f32 %v763, %v693
        %v768 = vmax.f32 %v764, %v583
        %v769 = vmax.f32 %v765, %v696
        %v770 = vmax.f32 %v766, %v586
        %v771 = vmax.f32 %v767, %v699
        %v772 = vmax.f32 %v768, %v589
        %v773 = vmax.f32 %v769, %v702
        %v774 = vmax.f32 %v770, %v592
        %v775 = vmax.f32 %v771, %v705
        %v776 = vmax.f32 %v772, %v595
        %v777 = vmax.f32 %v773, %v708
        %v778 = vmax.f32 %v774, %v598
        %v779 = vmax.f32 %v775, %v711
        %v780 = vmax.f32 %v776, %v601
        %v781 = vmax.f32 %v777, %v714
        %v782 = vmax.f32 %v778, %v604
        %v783 = vmax.f32 %v779, %v717
        %v784 = vmax.f32 %v780, %v607
        %v785 = vmax.f32 %v781, %v720
        %v786 = vmax.f32 %v782, %v610
        %v787 = vmax.f32 %v783, %v723
        %v788 = vmax.f32 %v784, %v613
        %v789 = vmax.f32 %v785, %v726
        %v790 = vmax.f32 %v786, %v616
        %v791 = vmax.f32 %v787, %v729
        %v792 = vmax.f32 %v788, %v789
        %v793 = vmax.f32 %v790, %v791
        %v794 = vmax.f32 %v792, %v793
        %795 = vmax.xlane.f32.xlu0 %v794
        %v796 = vpop.xlane.xlu0 %795
        %v797 = vrot.slane %v796, 4
        %v798 = vmax.f32 %v796, %v797
        %v799 = vrot.slane %v798, 2
        %v800 = vmax.f32 %v798, %v799
        %v801 = vrot.slane %v800, 1
        %v802 = vmax.f32 %v800, %v801
        %s803 = vtos %v802
        %v804 = vstv %s803
        %v805 = vmax.f32 %v731, %v804
        %v806 = vsub.f32 %v731, %v805
        %v807 = vmul.f32 %v806, 1.442695
        %v808 = vpow.pop %v807
        %v810 = vperm.slane %v805, 0
        %811 = vset.pattern.permute.xlu0 0
        %812 = vperm.xlu0 %811, %v810
        %v813 = vpop.permute.xlu0 %812
        %v815 = vsub.f32 %v523, %v813
        %v816 = vsub.f32 %v636, %v813
        %v817 = vsub.f32 %v526, %v813
        %v818 = vsub.f32 %v639, %v813
        %v819 = vsub.f32 %v529, %v813
        %v820 = vsub.f32 %v642, %v813
        %v821 = vsub.f32 %v532, %v813
        %v822 = vsub.f32 %v645, %v813
        %v823 = vsub.f32 %v535, %v813
        %v824 = vsub.f32 %v648, %v813
        %v825 = vsub.f32 %v538, %v813
        %v826 = vsub.f32 %v651, %v813
        %v827 = vsub.f32 %v541, %v813
        %v828 = vsub.f32 %v654, %v813
        %v829 = vsub.f32 %v544, %v813
        %v830 = vsub.f32 %v657, %v813
        %v831 = vsub.f32 %v547, %v813
        %v832 = vsub.f32 %v660, %v813
        %v833 = vsub.f32 %v550, %v813
        %v834 = vsub.f32 %v663, %v813
        %v835 = vsub.f32 %v553, %v813
        %v836 = vsub.f32 %v666, %v813
        %v837 = vsub.f32 %v556, %v813
        %v838 = vsub.f32 %v669, %v813
        %v839 = vsub.f32 %v559, %v813
        %v840 = vsub.f32 %v672, %v813
        %v841 = vsub.f32 %v562, %v813
        %v842 = vsub.f32 %v675, %v813
        %v843 = vsub.f32 %v565, %v813
        %v844 = vsub.f32 %v678, %v813
        %v845 = vsub.f32 %v568, %v813
        %v846 = vsub.f32 %v681, %v813
        %v847 = vsub.f32 %v571, %v813
        %v848 = vsub.f32 %v684, %v813
        %v849 = vsub.f32 %v574, %v813
        %v850 = vsub.f32 %v687, %v813
        %v851 = vsub.f32 %v577, %v813
        %v852 = vsub.f32 %v690, %v813
        %v853 = vsub.f32 %v580, %v813
        %v854 = vsub.f32 %v693, %v813
        %v855 = vsub.f32 %v583, %v813
        %v856 = vsub.f32 %v696, %v813
        %v857 = vsub.f32 %v586, %v813
        %v858 = vsub.f32 %v699, %v813
        %v859 = vsub.f32 %v589, %v813
        %v860 = vsub.f32 %v702, %v813
        %v861 = vsub.f32 %v592, %v813
        %v862 = vsub.f32 %v705, %v813
        %v863 = vsub.f32 %v595, %v813
        %v864 = vsub.f32 %v708, %v813
        %v865 = vsub.f32 %v598, %v813
        %v866 = vsub.f32 %v711, %v813
        %v867 = vsub.f32 %v601, %v813
        %v868 = vsub.f32 %v714, %v813
        %v869 = vsub.f32 %v604, %v813
        %v870 = vsub.f32 %v717, %v813
        %v871 = vsub.f32 %v607, %v813
        %v872 = vsub.f32 %v720, %v813
        %v873 = vsub.f32 %v610, %v813
        %v874 = vsub.f32 %v723, %v813
        %v875 = vsub.f32 %v613, %v813
        %v876 = vsub.f32 %v726, %v813
        %v877 = vsub.f32 %v616, %v813
        %v878 = vsub.f32 %v729, %v813
        %v879 = vmul.f32 %v815, 1.442695
        %v880 = vpow.pop %v879
        %v881 = vmul.f32 %v816, 1.442695
        %v882 = vpow.pop %v881
        %v883 = vmul.f32 %v817, 1.442695
        %v884 = vpow.pop %v883
        %v885 = vmul.f32 %v818, 1.442695
        %v886 = vpow.pop %v885
        %v887 = vmul.f32 %v819, 1.442695
        %v888 = vpow.pop %v887
        %v889 = vmul.f32 %v820, 1.442695
        %v890 = vpow.pop %v889
        %v891 = vmul.f32 %v821, 1.442695
        %v892 = vpow.pop %v891
        %v893 = vmul.f32 %v822, 1.442695
        %v894 = vpow.pop %v893
        %v895 = vmul.f32 %v823, 1.442695
        %v896 = vpow.pop %v895
        %v897 = vmul.f32 %v824, 1.442695
        %v898 = vpow.pop %v897
        %v899 = vmul.f32 %v825, 1.442695
        %v900 = vpow.pop %v899
        %v901 = vmul.f32 %v826, 1.442695
        %v902 = vpow.pop %v901
        %v903 = vmul.f32 %v827, 1.442695
        %v904 = vpow.pop %v903
        %v905 = vmul.f32 %v828, 1.442695
        %v906 = vpow.pop %v905
        %v907 = vmul.f32 %v829, 1.442695
        %v908 = vpow.pop %v907
        %v909 = vmul.f32 %v830, 1.442695
        %v910 = vpow.pop %v909
        %v911 = vmul.f32 %v831, 1.442695
        %v912 = vpow.pop %v911
        %v913 = vmul.f32 %v832, 1.442695
        %v914 = vpow.pop %v913
        %v915 = vmul.f32 %v833, 1.442695
        %v916 = vpow.pop %v915
        %v917 = vmul.f32 %v834, 1.442695
        %v918 = vpow.pop %v917
        %v919 = vmul.f32 %v835, 1.442695
        %v920 = vpow.pop %v919
        %v921 = vmul.f32 %v836, 1.442695
        %v922 = vpow.pop %v921
        %v923 = vmul.f32 %v837, 1.442695
        %v924 = vpow.pop %v923
        %v925 = vmul.f32 %v838, 1.442695
        %v926 = vpow.pop %v925
        %v927 = vmul.f32 %v839, 1.442695
        %v928 = vpow.pop %v927
        %v929 = vmul.f32 %v840, 1.442695
        %v930 = vpow.pop %v929
        %v931 = vmul.f32 %v841, 1.442695
        %v932 = vpow.pop %v931
        %v933 = vmul.f32 %v842, 1.442695
        %v934 = vpow.pop %v933
        %v935 = vmul.f32 %v843, 1.442695
        %v936 = vpow.pop %v935
        %v937 = vmul.f32 %v844, 1.442695
        %v938 = vpow.pop %v937
        %v939 = vmul.f32 %v845, 1.442695
        %v940 = vpow.pop %v939
        %v941 = vmul.f32 %v846, 1.442695
        %v942 = vpow.pop %v941
        %v943 = vmul.f32 %v847, 1.442695
        %v944 = vpow.pop %v943
        %v945 = vmul.f32 %v848, 1.442695
        %v946 = vpow.pop %v945
        %v947 = vmul.f32 %v849, 1.442695
        %v948 = vpow.pop %v947
        %v949 = vmul.f32 %v850, 1.442695
        %v950 = vpow.pop %v949
        %v951 = vmul.f32 %v851, 1.442695
        %v952 = vpow.pop %v951
        %v953 = vmul.f32 %v852, 1.442695
        %v954 = vpow.pop %v953
        %v955 = vmul.f32 %v853, 1.442695
        %v956 = vpow.pop %v955
        %v957 = vmul.f32 %v854, 1.442695
        %v958 = vpow.pop %v957
        %v959 = vmul.f32 %v855, 1.442695
        %v960 = vpow.pop %v959
        %v961 = vmul.f32 %v856, 1.442695
        %v962 = vpow.pop %v961
        %v963 = vmul.f32 %v857, 1.442695
        %v964 = vpow.pop %v963
        %v965 = vmul.f32 %v858, 1.442695
        %v966 = vpow.pop %v965
        %v967 = vmul.f32 %v859, 1.442695
        %v968 = vpow.pop %v967
        %v969 = vmul.f32 %v860, 1.442695
        %v970 = vpow.pop %v969
        %v971 = vmul.f32 %v861, 1.442695
        %v972 = vpow.pop %v971
        %v973 = vmul.f32 %v862, 1.442695
        %v974 = vpow.pop %v973
        %v975 = vmul.f32 %v863, 1.442695
        %v976 = vpow.pop %v975
        %v977 = vmul.f32 %v864, 1.442695
        %v978 = vpow.pop %v977
        %v979 = vmul.f32 %v865, 1.442695
        %v980 = vpow.pop %v979
        %v981 = vmul.f32 %v866, 1.442695
        %v982 = vpow.pop %v981
        %v983 = vmul.f32 %v867, 1.442695
        %v984 = vpow.pop %v983
        %v985 = vmul.f32 %v868, 1.442695
        %v986 = vpow.pop %v985
        %v987 = vmul.f32 %v869, 1.442695
        %v988 = vpow.pop %v987
        %v989 = vmul.f32 %v870, 1.442695
        %v990 = vpow.pop %v989
        %v991 = vmul.f32 %v871, 1.442695
        %v992 = vpow.pop %v991
        %v993 = vmul.f32 %v872, 1.442695
        %v994 = vpow.pop %v993
        %v995 = vmul.f32 %v873, 1.442695
        %v996 = vpow.pop %v995
        %v997 = vmul.f32 %v874, 1.442695
        %v998 = vpow.pop %v997
        %v999 = vmul.f32 %v875, 1.442695
        %v1000 = vpow.pop %v999
        %v1001 = vmul.f32 %v876, 1.442695
        %v1002 = vpow.pop %v1001
        %v1003 = vmul.f32 %v877, 1.442695
        %v1004 = vpow.pop %v1003
        %v1005 = vmul.f32 %v878, 1.442695
        %v1006 = vpow.pop %v1005
        %v1007 = vld [vmem:[#allocation2] sm:$0xff]
        %v1008 = vld [vmem:[#allocation2 + $0x8] sm:$0xff]
        %v1010 = vperm.slane %v808, 0
        %1011 = vset.pattern.permute.xlu0 0
        %1012 = vperm.xlu0 %1011, %v1010
        %v1013 = vpop.permute.xlu0 %1012
        %v1015 = vmul.f32 %v1013, %v1007
        %v1016 = vmul.f32 %v1013, %v1008
        %1017 = vmatpush.msra.mxu0 %v940
        %1018 = vmatpush.msra.mxu0 %v936
        %1019 = vmatpush.msra.mxu0 %v932
        %1020 = vmatpush.msra.mxu0 %v928
        %1021 = vmatpush.msra.mxu0 %v924
        %1022 = vmatpush.msra.mxu0 %v920
        %1023 = vmatpush.msra.mxu0 %v916
        %1024 = vmatpush.msra.mxu0 %v912
        %1025 = vmatpush.msra.mxu0 %v908
        %1026 = vmatpush.msra.mxu0 %v904
        %1027 = vmatpush.msra.mxu0 %v900
        %1028 = vmatpush.msra.mxu0 %v896
        %1029 = vmatpush.msra.mxu0 %v892
        %1030 = vmatpush.msra.mxu0 %v888
        %1031 = vmatpush.msra.mxu0 %v884
        %1032 = vmatpush.msra.mxu0 %v880
        %1033 = vmatmul.f32.gmra.mxu0 %v341
        %v1034 = vpop.f32.mrf.mxu0
        %v1035 = vadd.f32 0.0, %v1034
        %1036 = vdwg.mxu0
        %1037 = vmatpush.msra.mxu0 %v1004
        %1038 = vmatpush.msra.mxu0 %v1000
        %1039 = vmatpush.msra.mxu0 %v996
        %1040 = vmatpush.msra.mxu0 %v992
        %1041 = vmatpush.msra.mxu0 %v988
        %1042 = vmatpush.msra.mxu0 %v984
        %1043 = vmatpush.msra.mxu0 %v980
        %1044 = vmatpush.msra.mxu0 %v976
        %1045 = vmatpush.msra.mxu0 %v972
        %1046 = vmatpush.msra.mxu0 %v968
        %1047 = vmatpush.msra.mxu0 %v964
        %1048 = vmatpush.msra.mxu0 %v960
        %1049 = vmatpush.msra.mxu0 %v956
        %1050 = vmatpush.msra.mxu0 %v952
        %1051 = vmatpush.msra.mxu0 %v948
        %1052 = vmatpush.msra.mxu0 %v944
        %1053 = vmatmul.f32.gmra.mxu0 %v342
        %v1054 = vpop.f32.mrf.mxu0
        %v1055 = vadd.f32 %v1035, %v1054
        %1056 = vdwg.mxu0
        %1057 = vmatpush.msra.mxu0 %v942
        %1058 = vmatpush.msra.mxu0 %v938
        %1059 = vmatpush.msra.mxu0 %v934
        %1060 = vmatpush.msra.mxu0 %v930
        %1061 = vmatpush.msra.mxu0 %v926
        %1062 = vmatpush.msra.mxu0 %v922
        %1063 = vmatpush.msra.mxu0 %v918
        %1064 = vmatpush.msra.mxu0 %v914
        %1065 = vmatpush.msra.mxu0 %v910
        %1066 = vmatpush.msra.mxu0 %v906
        %1067 = vmatpush.msra.mxu0 %v902
        %1068 = vmatpush.msra.mxu0 %v898
        %1069 = vmatpush.msra.mxu0 %v894
        %1070 = vmatpush.msra.mxu0 %v890
        %1071 = vmatpush.msra.mxu0 %v886
        %1072 = vmatpush.msra.mxu0 %v882
        %1073 = vmatmul.f32.gmra.mxu0 %v341
        %v1074 = vpop.f32.mrf.mxu0
        %v1075 = vadd.f32 0.0, %v1074
        %1076 = vdwg.mxu0
        %1077 = vmatpush.msra.mxu0 %v1006
        %1078 = vmatpush.msra.mxu0 %v1002
        %1079 = vmatpush.msra.mxu0 %v998
        %1080 = vmatpush.msra.mxu0 %v994
        %1081 = vmatpush.msra.mxu0 %v990
        %1082 = vmatpush.msra.mxu0 %v986
        %1083 = vmatpush.msra.mxu0 %v982
        %1084 = vmatpush.msra.mxu0 %v978
        %1085 = vmatpush.msra.mxu0 %v974
        %1086 = vmatpush.msra.mxu0 %v970
        %1087 = vmatpush.msra.mxu0 %v966
        %1088 = vmatpush.msra.mxu0 %v962
        %1089 = vmatpush.msra.mxu0 %v958
        %1090 = vmatpush.msra.mxu0 %v954
        %1091 = vmatpush.msra.mxu0 %v950
        %1092 = vmatpush.msra.mxu0 %v946
        %1093 = vmatmul.f32.gmra.mxu0 %v342
        %v1094 = vpop.f32.mrf.mxu0
        %v1095 = vadd.f32 %v1075, %v1094
        %1096 = vdwg.mxu0
        %v1097 = vadd.f32 %v1015, %v1055
        %v1098 = vadd.f32 %v1016, %v1095
        %1099 = vst [vmem:[#allocation2] sm:$0xff] %v1097
        %1100 = vst [vmem:[#allocation2 + $0x8] sm:$0xff] %v1098
        %vm1101 = vcmask 0
        %1102 = vst.msk [vmem:[#allocation3] sm:$0x1] %vm1101, %v805
        // Predicated region
        $region49: #{tpu_custom_call.1} parent=35 // pred_check
          %p1103 = pneg %p268
        $region50: #{tpu_custom_call.1} parent=35 // pred_check_branch
          %1105 = sbr.rel (%p1103) target = $region52
        $region51: #{tpu_custom_call.1} parent=35 // pred_region
          %v1106 = vld [vmem:[#allocation2] sm:$0xff]
          %v1107 = vld [vmem:[#allocation2 + $0x8] sm:$0xff]
          %v1110 = vrot.slane %v1106, 4
          %v1111 = vrot.slane %v1107, 4
          %vm1114 = vcmask 1040384
          %v1115 = vsel %vm1114, %v1110, 0.0
          %v1116 = vsel %vm1114, %v1111, 0.0
          %v1117 = vadd.f32 %v1115, %v1116
          %1118 = vadd.xlane.f32.xlu0 %v1117
          %v1119 = vpop.xlane.xlu0 %1118
          %v1120 = vrot.slane %v1119, 4
          %v1121 = vadd.f32 %v1119, %v1120
          %v1122 = vrot.slane %v1121, 2
          %v1123 = vadd.f32 %v1121, %v1122
          %v1124 = vrot.slane %v1123, 1
          %v1125 = vadd.f32 %v1123, %v1124
          %s1126 = vtos %v1125
          %v1127 = vstv %s1126
          %v1128 = vrcp.pop %v1127
          %v1129 = vmul.f32 %v1127, %v1128
          %v1130 = vsub.f32 1.0, %v1129
          %v1131 = vmul.f32 %v1128, %v1130
          %v1132 = vadd.f32 %v1128, %v1131
          %vm1133 = vweird.f32 %v1127
          %vm1134 = vweird.f32 %v1128
          %vm1135 = vmor %vm1133, %vm1134
          %v1136 = vsel %vm1135, %v1128, %v1132
          %v1137 = vand.u32 2147483647, %v1127
          %vm1138 = vcmp.eq.f32.partialorder %v1137, 8.507059e+37
          %v1139 = vand.u32 %v1127, 2147483648
          %v1140 = vor.u32 1.1754944e-38, %v1139
          %v1141 = vsel %vm1138, %v1140, %v1136
          %v1142 = vmul.f32 1.0, %v1141
          %v1143 = vmul.f32 %v1106, %v1142
          %v1144 = vmul.f32 %v1107, %v1142
          %v1145 = vld [vmem:[%s3] sm:$0xff]
          %v1146 = vld [vmem:[%s227] sm:$0xff]
          %v1147 = vld [vmem:[%s227 + $0x8] sm:$0xff]
          %v1149 = vsel %vm285, %v1145, 0
          %1151 = vmatpush.msra.mxu0 0.0
          %1152 = vmatpush.msra.mxu0 0.0
          %1153 = vmatpush.msra.mxu0 0.0
          %1154 = vmatpush.msra.mxu0 0.0
          %1155 = vmatpush.msra.mxu0 0.0
          %1156 = vmatpush.msra.mxu0 0.0
          %1157 = vmatpush.msra.mxu0 0.0
          %1158 = vmatpush.msra.mxu0 0.0
          %1159 = vmatpush.msra.mxu0 0.0
          %1160 = vmatpush.msra.mxu0 0.0
          %1161 = vmatpush.msra.mxu0 0.0
          %1162 = vmatpush.msra.mxu0 0.0
          %1163 = vmatpush.msra.mxu0 0.0
          %1164 = vmatpush.msra.mxu0 0.0
          %1165 = vmatpush.msra.mxu0 0.0
          %1166 = vmatpush.msra.mxu0 %v1143
          %1167 = vmatmul.f32.gmra.mxu0 %v1149
          %v1168 = vpop.f32.mrf.mxu0
          %v1169 = vadd.f32 %v1146, %v1168
          %1170 = vdwg.mxu0
          %1171 = vmatpush.msra.mxu0 0.0
          %1172 = vmatpush.msra.mxu0 0.0
          %1173 = vmatpush.msra.mxu0 0.0
          %1174 = vmatpush.msra.mxu0 0.0
          %1175 = vmatpush.msra.mxu0 0.0
          %1176 = vmatpush.msra.mxu0 0.0
          %1177 = vmatpush.msra.mxu0 0.0
          %1178 = vmatpush.msra.mxu0 0.0
          %1179 = vmatpush.msra.mxu0 0.0
          %1180 = vmatpush.msra.mxu0 0.0
          %1181 = vmatpush.msra.mxu0 0.0
          %1182 = vmatpush.msra.mxu0 0.0
          %1183 = vmatpush.msra.mxu0 0.0
          %1184 = vmatpush.msra.mxu0 0.0
          %1185 = vmatpush.msra.mxu0 0.0
          %1186 = vmatpush.msra.mxu0 %v1144
          %1187 = vmatmul.f32.gmra.mxu0 %v1149
          %v1188 = vpop.f32.mrf.mxu0
          %v1189 = vadd.f32 %v1147, %v1188
          %1190 = vdwg.mxu0
          %1191 = vst [vmem:[%s267] sm:$0xff] %v1169
          %1192 = vst [vmem:[%s267 + $0x8] sm:$0xff] %v1189
        $region52: #{tpu_custom_call.1} parent=35 // pred_fallthru
          _
        %s1193 = sand.u32 %s138, 1
        %s1194 = scalar_lea.sflag [#allocation6], %s1193
        %s1195 = sand.u32 %s138, 1
        %s1196 = smul.addr %s1195, 16
        %s1197 = scalar_lea.vmem [#allocation9], %s1196
        // Predicated region
        $region53: #{tpu_custom_call.1} parent=35 // pred_check
          %p1198 = pneg %p148
        $region54: #{tpu_custom_call.1} parent=35 // pred_check_branch
          %1200 = sbr.rel (%p1198) target = $region56
        $region55: #{tpu_custom_call.1} parent=35 // pred_region
          %1202 = vsyncadd %s1194, 0
          %s1203 = smul.addr %s28, 2
          %s1204 = smul.addr %s1203, 8
          %s1205 = scalar_lea.hbm %s4, %s1204
          %s1207 = sshll.u32 %s1197, 4
          %s1208 = int_to_ptr.vmem [resolvable:$true] %s1207
          %s1209 = sshll.u32 %s1205, 4
          %s1210 = int_to_ptr.hbm [resolvable:$true] %s1209
          %1212 = dma.vmem_to_hbm [thread:$0]  %s1208, 256, %s1210, %s1194
        $region56: #{tpu_custom_call.1} parent=35 // pred_fallthru
          _
      $region36: #{tpu_custom_call.1} parent=5 // pred_fallthru
        _
      %p1213 = scmp.le.s32.totalorder 2, %s19
      // Predicated region
      $region57: #{tpu_custom_call.1} parent=5 // pred_check
        %p1214 = pneg %p1213
      $region58: #{tpu_custom_call.1} parent=5 // pred_check_branch
        %1216 = sbr.rel (%p1214) target = $region60
      $region59: #{tpu_custom_call.1} parent=5 // pred_region
        %s1217 = ssub.s32 %s19, 2
        // Predicated region
        $region61: #{tpu_custom_call.1} parent=59 // pred_check
          %p1218 = pneg %p154
        $region62: #{tpu_custom_call.1} parent=59 // pred_check_branch
          %1220 = sbr.rel (%p1218) target = $region64
        $region63: #{tpu_custom_call.1} parent=59 // pred_region
          %s1221 = sand.u32 %s139, 1
          %s1222 = scalar_lea.sflag [#allocation6], %s1221
          %s1223 = sand.u32 %s139, 1
          %s1224 = smul.addr %s1223, 16
          %s1225 = scalar_lea.vmem [#allocation9], %s1224
          %1227 = dma.done %s1222, 256
        $region64: #{tpu_custom_call.1} parent=59 // pred_fallthru
          _
      $region60: #{tpu_custom_call.1} parent=5 // pred_fallthru
        _
    $region6: #{tpu_custom_call.1} parent=1 // loop_footer
      %s23 = sadd.s32 1, %s19
    $region7: #{tpu_custom_call.1} parent=1 // loop_footer_branch
      %18 = sbr.rel target = $region3
    $region8: #{tpu_custom_call.1} parent=1 // loop_exit
      _
    %1228 = vsyncpa [#allocation5], 1
    %s1229 = scalar_lea.sflag [#allocation5], 1
    %1230 = vsyncpa %s1229, 1
    %1231 = vsyncpa [#allocation8], 1
    %s1232 = scalar_lea.sflag [#allocation8], 1
    %1233 = vsyncpa %s1232, 1
    %1234 = vsyncpa [#allocation6], 1
    %s1235 = scalar_lea.sflag [#allocation6], 1
    %1236 = vsyncpa %s1235, 1

</llo_original>
